<compile_context>
chip_gen: v5e
topology: v5e:2x2
jax: 0.10.0
libtpu: 0.0.40
codegen_flags: <defaults>
</compile_context>

<pallas_src>
import math

import jax
import jax.numpy as jnp
from jax.experimental import pallas as pl
from jax.experimental.pallas import tpu as pltpu


def _value_net_kernel(x_ref,
                      w1_ref, b1_ref,
                      w2_ref, b2_ref,
                      w3_ref, b3_ref,
                      w4_ref, b4_ref,
                      w5_row_ref, b5_ref,
                      o_ref):
    # x: [TB, state_dim] f32
    h = x_ref[...]
    for w_ref, b_ref in ((w1_ref, b1_ref), (w2_ref, b2_ref),
                         (w3_ref, b3_ref), (w4_ref, b4_ref)):
        # Cast only the MXU operands to the weight dtype (bf16 on v6e/v7x);
        # f32 accumulation; bias-add / ReLU stay in f32 on the VPU.
        h = jnp.dot(h.astype(w_ref.dtype), w_ref[...],
                    preferred_element_type=jnp.float32) + b_ref[...]
        h = jnp.maximum(h, 0.0)
    # fc5 (K=state_dim, N=1): VPU multiply + lane reduction instead of an MXU
    # matmul with a single useful result lane.
    o_ref[...] = (jnp.sum(h * w5_row_ref[...], axis=-1, keepdims=True)
                  + b5_ref[...])


def value_net_forward(x, params, provider_num, categories_len,
                      *, use_bf16=False, block_batch=512):
    """Forward pass matching ValueNet.forward.

    x: leading dim = batch, trailing dims flatten to provider_num*(categories_len+1).
    params: list of 5 (weight[in,out], bias[1,out]) pairs (transposed vs PyTorch).
    use_bf16: feed bf16 operands to the MXU (f32 accumulate) — v6e/v7x perf path.
    """
    state_dim = provider_num * (categories_len + 1)
    batch = x.shape[0]
    x_flat = jnp.reshape(x, (batch, state_dim)).astype(jnp.float32)

    (w1, b1), (w2, b2), (w3, b3), (w4, b4), (w5, b5) = params

    # fc5 weight as a lane-major [1, state_dim] row for the VPU reduce (kept f32).
    w5_row = jnp.reshape(w5, (state_dim, 1)).T.astype(jnp.float32)

    if use_bf16:
        w1, w2, w3, w4 = (w.astype(jnp.bfloat16) for w in (w1, w2, w3, w4))

    # Batch tile: multiple of 8 (f32 sublanes); 512 rows for big batches.
    if batch >= block_batch:
        tb = block_batch
    else:
        tb = max(8, ((batch + 7) // 8) * 8)
    num_tiles = pl.cdiv(batch, tb)
    padded_b = num_tiles * tb
    if padded_b != batch:
        x_flat = jnp.pad(x_flat, ((0, padded_b - batch), (0, 0)))

    hidden = state_dim * 2
    flops = 2 * padded_b * (state_dim * hidden + hidden * 2 * hidden
                            + 2 * hidden * hidden + hidden * state_dim + state_dim)
    weight_bytes = sum(int(a.size) * a.dtype.itemsize
                       for a in (w1, b1, w2, b2, w3, b3, w4, b4, w5_row, b5))
    bytes_accessed = int(x_flat.size) * 4 + weight_bytes + padded_b * 4

    const_map = lambda i: (0, 0)
    in_specs = [pl.BlockSpec((tb, state_dim), lambda i: (i, 0))]
    for a in (w1, b1, w2, b2, w3, b3, w4, b4, w5_row, b5):
        in_specs.append(pl.BlockSpec(a.shape, const_map))  # VMEM-resident

    out = pl.pallas_call(
        _value_net_kernel,
        out_shape=jax.ShapeDtypeStruct((padded_b, 1), jnp.float32),
        grid=(num_tiles,),
        in_specs=in_specs,
        out_specs=pl.BlockSpec((tb, 1), lambda i: (i, 0)),
        compiler_params=pltpu.CompilerParams(
            dimension_semantics=("parallel",)),
        cost_estimate=pl.CostEstimate(flops=flops, transcendentals=0,
                                      bytes_accessed=bytes_accessed),
    )(x_flat, w1, b1, w2, b2, w3, b3, w4, b4, w5_row, b5)
    return out[:batch]


def _reference_forward(x, params, provider_num, categories_len, *, bf16_matmul=False):
    state_dim = provider_num * (categories_len + 1)
    h = jnp.reshape(x, (x.shape[0], state_dim)).astype(jnp.float32)
    (w1, b1), (w2, b2), (w3, b3), (w4, b4), (w5, b5) = params
    for w, b in ((w1, b1), (w2, b2), (w3, b3), (w4, b4)):
        if bf16_matmul:
            h = jnp.dot(h.astype(jnp.bfloat16), w.astype(jnp.bfloat16),
                        preferred_element_type=jnp.float32) + b
        else:
            h = jnp.dot(h, w, preferred_element_type=jnp.float32) + b
        h = jnp.maximum(h, 0.0)
    return jnp.dot(h, w5, preferred_element_type=jnp.float32) + b5


def xavier_uniform(key, fan_in, fan_out, dtype=jnp.float32):
    # Matches torch.nn.init.xavier_uniform_ (gain=1); stored transposed [in, out].
    limit = math.sqrt(6.0 / (fan_in + fan_out))
    return jax.random.uniform(key, (fan_in, fan_out), dtype=dtype,
                              minval=-limit, maxval=limit)


def linear_bias_default(key, fan_in, fan_out, dtype=jnp.float32):
    # PyTorch nn.Linear default bias init: U(-1/sqrt(fan_in), 1/sqrt(fan_in)).
    bound = 1.0 / math.sqrt(fan_in)
    return jax.random.uniform(key, (1, fan_out), dtype=dtype,
                              minval=-bound, maxval=bound)


def init_value_net_params(key, provider_num, categories_len):
    state_dim = provider_num * (categories_len + 1)
    hidden_dim = state_dim * 2
    dims = [
        (state_dim, hidden_dim),        # fc1
        (hidden_dim, 2 * hidden_dim),   # fc2
        (2 * hidden_dim, hidden_dim),   # fc3
        (hidden_dim, state_dim),        # fc4
        (state_dim, 1),                 # fc5
    ]
    params = []
    for (fin, fout) in dims:
        key, kw, kb = jax.random.split(key, 3)
        params.append((xavier_uniform(kw, fin, fout),
                       linear_bias_default(kb, fin, fout)))
    return params


if __name__ == "__main__":
    provider_num = 4
    categories_len = 7          # state_dim = 32, hidden = 64, 2*hidden = 128

    key = jax.random.PRNGKey(0)
    key, kparams = jax.random.split(key)
    params = init_value_net_params(kparams, provider_num, categories_len)

    # Small batch, module-shaped input [batch, provider_num, categories_len + 1].
    key, kx = jax.random.split(key)
    x_small = jax.random.normal(kx, (2, provider_num, categories_len + 1),
                                dtype=jnp.float32)
    out_small = jax.block_until_ready(
        value_net_forward(x_small, params, provider_num, categories_len))
    ref_small = _reference_forward(x_small, params, provider_num, categories_len)
    assert out_small.shape == (2, 1)
    assert jnp.allclose(out_small, ref_small, atol=1e-5, rtol=1e-5)

    # Larger batch: exercises the batch grid (TB=512 -> 3 tiles after padding).
    key, kb = jax.random.split(key)
    x_big = jax.random.normal(kb, (1040, provider_num, categories_len + 1),
                              dtype=jnp.float32)
    out_big = jax.block_until_ready(
        value_net_forward(x_big, params, provider_num, categories_len))
    ref_big = _reference_forward(x_big, params, provider_num, categories_len)
    assert out_big.shape == (1040, 1)
    assert jnp.allclose(out_big, ref_big, atol=1e-4, rtol=1e-4)

    # bf16-MXU path (v6e/v7x perf): compare against a reference doing the same
    # bf16-operand / f32-accumulate math.
    out_bf16 = jax.block_until_ready(
        value_net_forward(x_big, params, provider_num, categories_len,
                          use_bf16=True))
    ref_bf16 = _reference_forward(x_big, params, provider_num, categories_len,
                                  bf16_matmul=True)
    assert jnp.allclose(out_bf16, ref_bf16, atol=2e-3, rtol=2e-3)

    print("KERNEL_OK")
</pallas_src>

<mosaic_0001>
module attributes {stable_mosaic.version = 11 : i64} {
  func.func @_value_net_kernel(%arg0: i32, %arg1: memref<8x32xf32, #tpu.memory_space<vmem>>, %arg2: memref<32x64xf32, #tpu.memory_space<vmem>>, %arg3: memref<1x64xf32, #tpu.memory_space<vmem>>, %arg4: memref<64x128xf32, #tpu.memory_space<vmem>>, %arg5: memref<1x128xf32, #tpu.memory_space<vmem>>, %arg6: memref<128x64xf32, #tpu.memory_space<vmem>>, %arg7: memref<1x64xf32, #tpu.memory_space<vmem>>, %arg8: memref<64x32xf32, #tpu.memory_space<vmem>>, %arg9: memref<1x32xf32, #tpu.memory_space<vmem>>, %arg10: memref<1x32xf32, #tpu.memory_space<vmem>>, %arg11: memref<1x1xf32, #tpu.memory_space<vmem>>, %arg12: memref<8x1xf32, #tpu.memory_space<vmem>>) attributes {dimension_semantics = [#tpu.dimension_semantics<parallel>], iteration_bounds = array<i64: 1>, scalar_prefetch = 0 : i64, scratch_operands = 0 : i64, tpu.core_type = #tpu.core_type<tc>, window_params = [{transform_indices = @transform_0, window_bounds = array<i64: 8, 32>}, {pipeline_mode = #tpu.pipeline_mode<synchronous>, transform_indices = @transform_1, window_bounds = array<i64: 32, 64>}, {pipeline_mode = #tpu.pipeline_mode<synchronous>, transform_indices = @transform_2, window_bounds = array<i64: 1, 64>}, {pipeline_mode = #tpu.pipeline_mode<synchronous>, transform_indices = @transform_3, window_bounds = array<i64: 64, 128>}, {pipeline_mode = #tpu.pipeline_mode<synchronous>, transform_indices = @transform_4, window_bounds = array<i64: 1, 128>}, {pipeline_mode = #tpu.pipeline_mode<synchronous>, transform_indices = @transform_5, window_bounds = array<i64: 128, 64>}, {pipeline_mode = #tpu.pipeline_mode<synchronous>, transform_indices = @transform_6, window_bounds = array<i64: 1, 64>}, {pipeline_mode = #tpu.pipeline_mode<synchronous>, transform_indices = @transform_7, window_bounds = array<i64: 64, 32>}, {pipeline_mode = #tpu.pipeline_mode<synchronous>, transform_indices = @transform_8, window_bounds = array<i64: 1, 32>}, {pipeline_mode = #tpu.pipeline_mode<synchronous>, transform_indices = @transform_9, window_bounds = array<i64: 1, 32>}, {pipeline_mode = #tpu.pipeline_mode<synchronous>, transform_indices = @transform_10, window_bounds = array<i64: 1, 1>}, {transform_indices = @transform_11, window_bounds = array<i64: 8, 1>}]} {
    %c0 = arith.constant 0 : index
    %c0_0 = arith.constant 0 : index
    %0 = vector.load %arg1[%c0, %c0_0] : memref<8x32xf32, #tpu.memory_space<vmem>>, vector<8x32xf32>
    %c0_1 = arith.constant 0 : index
    %c0_2 = arith.constant 0 : index
    %1 = vector.load %arg2[%c0_1, %c0_2] : memref<32x64xf32, #tpu.memory_space<vmem>>, vector<32x64xf32>
    %cst = arith.constant dense<0.000000e+00> : vector<8x64xf32>
    %2 = tpu.matmul %0, %1, %cst {dimension_numbers = #tpu.dot_dimension_numbers<[1], [0], [0], [1], [0, 0, 1, 1], [], []>} : vector<8x32xf32>, vector<32x64xf32>, vector<8x64xf32> -> vector<8x64xf32>
    %c0_3 = arith.constant 0 : index
    %c0_4 = arith.constant 0 : index
    %3 = vector.load %arg3[%c0_3, %c0_4] : memref<1x64xf32, #tpu.memory_space<vmem>>, vector<1x64xf32>
    %4 = vector.broadcast %3 : vector<1x64xf32> to vector<8x64xf32>
    %5 = arith.addf %2, %4 : vector<8x64xf32>
    %cst_5 = arith.constant 0.000000e+00 : f32
    %6 = vector.broadcast %cst_5 : f32 to vector<8x64xf32>
    %7 = arith.maximumf %5, %6 : vector<8x64xf32>
    %c0_6 = arith.constant 0 : index
    %c0_7 = arith.constant 0 : index
    %8 = vector.load %arg4[%c0_6, %c0_7] : memref<64x128xf32, #tpu.memory_space<vmem>>, vector<64x128xf32>
    %cst_8 = arith.constant dense<0.000000e+00> : vector<8x128xf32>
    %9 = tpu.matmul %7, %8, %cst_8 {dimension_numbers = #tpu.dot_dimension_numbers<[1], [0], [0], [1], [0, 0, 1, 1], [], []>} : vector<8x64xf32>, vector<64x128xf32>, vector<8x128xf32> -> vector<8x128xf32>
    %c0_9 = arith.constant 0 : index
    %c0_10 = arith.constant 0 : index
    %10 = vector.load %arg5[%c0_9, %c0_10] : memref<1x128xf32, #tpu.memory_space<vmem>>, vector<1x128xf32>
    %11 = vector.broadcast %10 : vector<1x128xf32> to vector<8x128xf32>
    %12 = arith.addf %9, %11 : vector<8x128xf32>
    %cst_11 = arith.constant 0.000000e+00 : f32
    %13 = vector.broadcast %cst_11 : f32 to vector<8x128xf32>
    %14 = arith.maximumf %12, %13 : vector<8x128xf32>
    %c0_12 = arith.constant 0 : index
    %c0_13 = arith.constant 0 : index
    %15 = vector.load %arg6[%c0_12, %c0_13] : memref<128x64xf32, #tpu.memory_space<vmem>>, vector<128x64xf32>
    %cst_14 = arith.constant dense<0.000000e+00> : vector<8x64xf32>
    %16 = tpu.matmul %14, %15, %cst_14 {dimension_numbers = #tpu.dot_dimension_numbers<[1], [0], [0], [1], [0, 0, 1, 1], [], []>} : vector<8x128xf32>, vector<128x64xf32>, vector<8x64xf32> -> vector<8x64xf32>
    %c0_15 = arith.constant 0 : index
    %c0_16 = arith.constant 0 : index
    %17 = vector.load %arg7[%c0_15, %c0_16] : memref<1x64xf32, #tpu.memory_space<vmem>>, vector<1x64xf32>
    %18 = vector.broadcast %17 : vector<1x64xf32> to vector<8x64xf32>
    %19 = arith.addf %16, %18 : vector<8x64xf32>
    %cst_17 = arith.constant 0.000000e+00 : f32
    %20 = vector.broadcast %cst_17 : f32 to vector<8x64xf32>
    %21 = arith.maximumf %19, %20 : vector<8x64xf32>
    %c0_18 = arith.constant 0 : index
    %c0_19 = arith.constant 0 : index
    %22 = vector.load %arg8[%c0_18, %c0_19] : memref<64x32xf32, #tpu.memory_space<vmem>>, vector<64x32xf32>
    %cst_20 = arith.constant dense<0.000000e+00> : vector<8x32xf32>
    %23 = tpu.matmul %21, %22, %cst_20 {dimension_numbers = #tpu.dot_dimension_numbers<[1], [0], [0], [1], [0, 0, 1, 1], [], []>} : vector<8x64xf32>, vector<64x32xf32>, vector<8x32xf32> -> vector<8x32xf32>
    %c0_21 = arith.constant 0 : index
    %c0_22 = arith.constant 0 : index
    %24 = vector.load %arg9[%c0_21, %c0_22] : memref<1x32xf32, #tpu.memory_space<vmem>>, vector<1x32xf32>
    %25 = vector.broadcast %24 : vector<1x32xf32> to vector<8x32xf32>
    %26 = arith.addf %23, %25 : vector<8x32xf32>
    %cst_23 = arith.constant 0.000000e+00 : f32
    %27 = vector.broadcast %cst_23 : f32 to vector<8x32xf32>
    %28 = arith.maximumf %26, %27 : vector<8x32xf32>
    %c0_24 = arith.constant 0 : index
    %c0_25 = arith.constant 0 : index
    %29 = vector.load %arg10[%c0_24, %c0_25] : memref<1x32xf32, #tpu.memory_space<vmem>>, vector<1x32xf32>
    %30 = vector.broadcast %29 : vector<1x32xf32> to vector<8x32xf32>
    %31 = arith.mulf %28, %30 : vector<8x32xf32>
    %cst_26 = arith.constant dense<0.000000e+00> : vector<8xf32>
    %32 = vector.multi_reduction <add>, %31, %cst_26 [1] : vector<8x32xf32> to vector<8xf32>
    %33 = vector.shape_cast %32 : vector<8xf32> to vector<8x1xf32>
    %c0_27 = arith.constant 0 : index
    %c0_28 = arith.constant 0 : index
    %34 = vector.load %arg11[%c0_27, %c0_28] : memref<1x1xf32, #tpu.memory_space<vmem>>, vector<1x1xf32>
    %35 = vector.broadcast %34 : vector<1x1xf32> to vector<8x1xf32>
    %36 = arith.addf %33, %35 : vector<8x1xf32>
    %c0_29 = arith.constant 0 : index
    %c0_30 = arith.constant 0 : index
    %37 = vector.load %arg12[%c0_29, %c0_30] : memref<8x1xf32, #tpu.memory_space<vmem>>, vector<8x1xf32>
    tpu.vector_store %arg12[%c0_29, %c0_30], %36 {strides = array<i32>} : memref<8x1xf32, #tpu.memory_space<vmem>>, vector<8x1xf32>,
    return
  }
  func.func @transform_0(%arg0: i32) -> (i32, i32) {
    %c0_i32 = arith.constant 0 : i32
    %c0_i32_0 = arith.constant 0 : i32
    return %arg0, %c0_i32 : i32, i32
  }
  func.func @transform_1(%arg0: i32) -> (i32, i32) {
    %c0_i32 = arith.constant 0 : i32
    %c0_i32_0 = arith.constant 0 : i32
    %c0_i32_1 = arith.constant 0 : i32
    return %c0_i32, %c0_i32_0 : i32, i32
  }
  func.func @transform_2(%arg0: i32) -> (i32, i32) {
    %c0_i32 = arith.constant 0 : i32
    %c0_i32_0 = arith.constant 0 : i32
    %c0_i32_1 = arith.constant 0 : i32
    return %c0_i32, %c0_i32_0 : i32, i32
  }
  func.func @transform_3(%arg0: i32) -> (i32, i32) {
    %c0_i32 = arith.constant 0 : i32
    %c0_i32_0 = arith.constant 0 : i32
    %c0_i32_1 = arith.constant 0 : i32
    return %c0_i32, %c0_i32_0 : i32, i32
  }
  func.func @transform_4(%arg0: i32) -> (i32, i32) {
    %c0_i32 = arith.constant 0 : i32
    %c0_i32_0 = arith.constant 0 : i32
    %c0_i32_1 = arith.constant 0 : i32
    return %c0_i32, %c0_i32_0 : i32, i32
  }
  func.func @transform_5(%arg0: i32) -> (i32, i32) {
    %c0_i32 = arith.constant 0 : i32
    %c0_i32_0 = arith.constant 0 : i32
    %c0_i32_1 = arith.constant 0 : i32
    return %c0_i32, %c0_i32_0 : i32, i32
  }
  func.func @transform_6(%arg0: i32) -> (i32, i32) {
    %c0_i32 = arith.constant 0 : i32
    %c0_i32_0 = arith.constant 0 : i32
    %c0_i32_1 = arith.constant 0 : i32
    return %c0_i32, %c0_i32_0 : i32, i32
  }
  func.func @transform_7(%arg0: i32) -> (i32, i32) {
    %c0_i32 = arith.constant 0 : i32
    %c0_i32_0 = arith.constant 0 : i32
    %c0_i32_1 = arith.constant 0 : i32
    return %c0_i32, %c0_i32_0 : i32, i32
  }
  func.func @transform_8(%arg0: i32) -> (i32, i32) {
    %c0_i32 = arith.constant 0 : i32
    %c0_i32_0 = arith.constant 0 : i32
    %c0_i32_1 = arith.constant 0 : i32
    return %c0_i32, %c0_i32_0 : i32, i32
  }
  func.func @transform_9(%arg0: i32) -> (i32, i32) {
    %c0_i32 = arith.constant 0 : i32
    %c0_i32_0 = arith.constant 0 : i32
    %c0_i32_1 = arith.constant 0 : i32
    return %c0_i32, %c0_i32_0 : i32, i32
  }
  func.func @transform_10(%arg0: i32) -> (i32, i32) {
    %c0_i32 = arith.constant 0 : i32
    %c0_i32_0 = arith.constant 0 : i32
    %c0_i32_1 = arith.constant 0 : i32
    return %c0_i32, %c0_i32_0 : i32, i32
  }
  func.func @transform_11(%arg0: i32) -> (i32, i32) {
    %c0_i32 = arith.constant 0 : i32
    %c0_i32_0 = arith.constant 0 : i32
    return %arg0, %c0_i32 : i32, i32
  }
}

</mosaic_0001>

<llo_original>
// kernel: tpu_custom_call.1
$region0: #{tpu_custom_call.1}
  #allocation0 [shape = 'u32[]', space=smem, size = 0x4, offset = 0x4, fixed_abs, tag = 'smem constant byte address 0x4 - core index']
  #allocation1 [shape = 'u32[72,128]{1,0:T(1,128)}', space=vmem, size = 0x9000, scoped, tag = 'internal scratch']
  #allocation2 [shape = 'f32[1,1]{1,0:T(1,128)S(1)}', space=vmem, size = 0x200, scoped, tag = 'scoped memory for tpu_custom_call.1']
  %s0 = inlined_call_operand.vmem [shape: f32[8,32], index: 0, kind: input, shape index: {}]
  %s1 = inlined_call_operand.vmem [shape: f32[32,64], index: 1, kind: input, shape index: {}]
  %s2 = inlined_call_operand.vmem [shape: f32[1,64], index: 2, kind: input, shape index: {}]
  %s3 = inlined_call_operand.vmem [shape: f32[64,128], index: 3, kind: input, shape index: {}]
  %s4 = inlined_call_operand.vmem [shape: f32[1,128], index: 4, kind: input, shape index: {}]
  %s5 = inlined_call_operand.vmem [shape: f32[128,64], index: 5, kind: input, shape index: {}]
  %s6 = inlined_call_operand.vmem [shape: f32[1,64], index: 6, kind: input, shape index: {}]
  %s7 = inlined_call_operand.vmem [shape: f32[64,32], index: 7, kind: input, shape index: {}]
  %s8 = inlined_call_operand.vmem [shape: f32[1,32], index: 8, kind: input, shape index: {}]
  %s9 = inlined_call_operand.vmem [shape: f32[1,32], index: 9, kind: input, shape index: {}]
  %s10 = inlined_call_operand.<no memory space> [shape: f32[1,1], index: 10, kind: input, shape index: {}]
  %s11 = inlined_call_operand.vmem [shape: f32[8,1], index: 11, kind: output, shape index: {}]
  %s12 = sld [smem:[#allocation0]]
  $region54: #{tpu_custom_call.1} parent=0
    _
  %s14 = ssub.s32 1, %s12
  %s15 = scalar_select 0, %s14, %s12
  %v16 = vstv %s10
  %17 = vst [vmem:[#allocation2] sm:$0x1] %v16
  // Predicated region
  $region2: #{tpu_custom_call.1} parent=0 // pred_check
    _
  $region3: #{tpu_custom_call.1} parent=0 // pred_check_branch
    %19 = sbr.rel (0) target = $region5
  $region4: #{tpu_custom_call.1} parent=0 // pred_region
    _
  $region5: #{tpu_custom_call.1} parent=0 // pred_fallthru
    _
  // Predicated region
  $region6: #{tpu_custom_call.1} parent=0 // pred_check
    _
  $region7: #{tpu_custom_call.1} parent=0 // pred_check_branch
    %21 = sbr.rel (0) target = $region9
  $region8: #{tpu_custom_call.1} parent=0 // pred_region
    _
  $region9: #{tpu_custom_call.1} parent=0 // pred_fallthru
    _
  // Predicated region
  $region10: #{tpu_custom_call.1} parent=0 // pred_check
    _
  $region11: #{tpu_custom_call.1} parent=0 // pred_check_branch
    %23 = sbr.rel (0) target = $region13
  $region12: #{tpu_custom_call.1} parent=0 // pred_region
    _
  $region13: #{tpu_custom_call.1} parent=0 // pred_fallthru
    _
  // Predicated region
  $region14: #{tpu_custom_call.1} parent=0 // pred_check
    _
  $region15: #{tpu_custom_call.1} parent=0 // pred_check_branch
    %25 = sbr.rel (0) target = $region17
  $region16: #{tpu_custom_call.1} parent=0 // pred_region
    _
  $region17: #{tpu_custom_call.1} parent=0 // pred_fallthru
    _
  // Predicated region
  $region18: #{tpu_custom_call.1} parent=0 // pred_check
    _
  $region19: #{tpu_custom_call.1} parent=0 // pred_check_branch
    %27 = sbr.rel (0) target = $region21
  $region20: #{tpu_custom_call.1} parent=0 // pred_region
    _
  $region21: #{tpu_custom_call.1} parent=0 // pred_fallthru
    _
  // Predicated region
  $region22: #{tpu_custom_call.1} parent=0 // pred_check
    _
  $region23: #{tpu_custom_call.1} parent=0 // pred_check_branch
    %29 = sbr.rel (0) target = $region25
  $region24: #{tpu_custom_call.1} parent=0 // pred_region
    _
  $region25: #{tpu_custom_call.1} parent=0 // pred_fallthru
    _
  // Predicated region
  $region26: #{tpu_custom_call.1} parent=0 // pred_check
    _
  $region27: #{tpu_custom_call.1} parent=0 // pred_check_branch
    %31 = sbr.rel (0) target = $region29
  $region28: #{tpu_custom_call.1} parent=0 // pred_region
    _
  $region29: #{tpu_custom_call.1} parent=0 // pred_fallthru
    _
  // Predicated region
  $region30: #{tpu_custom_call.1} parent=0 // pred_check
    _
  $region31: #{tpu_custom_call.1} parent=0 // pred_check_branch
    %33 = sbr.rel (0) target = $region33
  $region32: #{tpu_custom_call.1} parent=0 // pred_region
    _
  $region33: #{tpu_custom_call.1} parent=0 // pred_fallthru
    _
  // Predicated region
  $region34: #{tpu_custom_call.1} parent=0 // pred_check
    _
  $region35: #{tpu_custom_call.1} parent=0 // pred_check_branch
    %35 = sbr.rel (0) target = $region37
  $region36: #{tpu_custom_call.1} parent=0 // pred_region
    _
  $region37: #{tpu_custom_call.1} parent=0 // pred_fallthru
    _
  // Predicated region
  $region38: #{tpu_custom_call.1} parent=0 // pred_check
    _
  $region39: #{tpu_custom_call.1} parent=0 // pred_check_branch
    %37 = sbr.rel (0) target = $region41
  $region40: #{tpu_custom_call.1} parent=0 // pred_region
    _
  $region41: #{tpu_custom_call.1} parent=0 // pred_fallthru
    _
  // Predicated region
  $region42: #{tpu_custom_call.1} parent=0 // pred_check
    _
  $region43: #{tpu_custom_call.1} parent=0 // pred_check_branch
    %39 = sbr.rel (0) target = $region45
  $region44: #{tpu_custom_call.1} parent=0 // pred_region
    _
  $region45: #{tpu_custom_call.1} parent=0 // pred_fallthru
    _
  %v40 = vld [vmem:[%s0] sm:$0xff]
  %v41 = vld [vmem:[%s1] sm:$0xff]
  %v42 = vld [vmem:[%s1 + $0x8] sm:$0xff]
  %v43 = vld [vmem:[%s1 + $0x10] sm:$0xff]
  %v44 = vld [vmem:[%s1 + $0x18] sm:$0xff]
  %v45 = vld [vmem:[%s2] sm:$0x1]
  %v47 = vperm.slane %v45, 0
  %vm49 = vcmask 261120
  %v51 = vsel %vm49, %v40, 0
  %53 = vmatpush.msra.mxu0 0.0
  %54 = vmatpush.msra.mxu0 0.0
  %55 = vmatpush.msra.mxu0 0.0
  %56 = vmatpush.msra.mxu0 0.0
  %57 = vmatpush.msra.mxu0 0.0
  %58 = vmatpush.msra.mxu0 0.0
  %59 = vmatpush.msra.mxu0 0.0
  %60 = vmatpush.msra.mxu0 0.0
  %61 = vmatpush.msra.mxu0 0.0
  %62 = vmatpush.msra.mxu0 0.0
  %63 = vmatpush.msra.mxu0 0.0
  %64 = vmatpush.msra.mxu0 0.0
  %65 = vmatpush.msra.mxu0 %v44
  %66 = vmatpush.msra.mxu0 %v43
  %67 = vmatpush.msra.mxu0 %v42
  %68 = vmatpush.msra.mxu0 %v41
  %69 = vmatmul.f32.gmra.mxu0 %v51
  %v70 = vpop.f32.mrf.mxu0
  %v71 = vadd.f32 %v47, %v70
  %72 = vdwg.mxu0
  %v73 = vmax.f32 %v71, 0.0
  %v74 = vld [vmem:[%s3] sm:$0xff]
  %v75 = vld [vmem:[%s3 + $0x8] sm:$0xff]
  %v76 = vld [vmem:[%s3 + $0x10] sm:$0xff]
  %v77 = vld [vmem:[%s3 + $0x18] sm:$0xff]
  %v78 = vld [vmem:[%s3 + $0x20] sm:$0xff]
  %v79 = vld [vmem:[%s3 + $0x28] sm:$0xff]
  %v80 = vld [vmem:[%s3 + $0x30] sm:$0xff]
  %v81 = vld [vmem:[%s3 + $0x38] sm:$0xff]
  %v82 = vld [vmem:[%s4] sm:$0x1]
  %v84 = vperm.slane %v82, 0
  %vm86 = vcmask 523264
  %v88 = vsel %vm86, %v73, 0
  %90 = vmatpush.msra.mxu0 0.0
  %91 = vmatpush.msra.mxu0 0.0
  %92 = vmatpush.msra.mxu0 0.0
  %93 = vmatpush.msra.mxu0 0.0
  %94 = vmatpush.msra.mxu0 0.0
  %95 = vmatpush.msra.mxu0 0.0
  %96 = vmatpush.msra.mxu0 0.0
  %97 = vmatpush.msra.mxu0 0.0
  %98 = vmatpush.msra.mxu0 %v81
  %99 = vmatpush.msra.mxu0 %v80
  %100 = vmatpush.msra.mxu0 %v79
  %101 = vmatpush.msra.mxu0 %v78
  %102 = vmatpush.msra.mxu0 %v77
  %103 = vmatpush.msra.mxu0 %v76
  %104 = vmatpush.msra.mxu0 %v75
  %105 = vmatpush.msra.mxu0 %v74
  %106 = vmatmul.f32.gmra.mxu0 %v88
  %v107 = vpop.f32.mrf.mxu0
  %v108 = vadd.f32 %v84, %v107
  %109 = vdwg.mxu0
  %v110 = vmax.f32 %v108, 0.0
  %v111 = vld [vmem:[%s5] sm:$0xff]
  %v112 = vld [vmem:[%s5 + $0x8] sm:$0xff]
  %v113 = vld [vmem:[%s5 + $0x10] sm:$0xff]
  %v114 = vld [vmem:[%s5 + $0x18] sm:$0xff]
  %v115 = vld [vmem:[%s5 + $0x20] sm:$0xff]
  %v116 = vld [vmem:[%s5 + $0x28] sm:$0xff]
  %v117 = vld [vmem:[%s5 + $0x30] sm:$0xff]
  %v118 = vld [vmem:[%s5 + $0x38] sm:$0xff]
  %v119 = vld [vmem:[%s5 + $0x40] sm:$0xff]
  %v120 = vld [vmem:[%s5 + $0x48] sm:$0xff]
  %v121 = vld [vmem:[%s5 + $0x50] sm:$0xff]
  %v122 = vld [vmem:[%s5 + $0x58] sm:$0xff]
  %v123 = vld [vmem:[%s5 + $0x60] sm:$0xff]
  %v124 = vld [vmem:[%s5 + $0x68] sm:$0xff]
  %v125 = vld [vmem:[%s5 + $0x70] sm:$0xff]
  %v126 = vld [vmem:[%s5 + $0x78] sm:$0xff]
  %v127 = vld [vmem:[%s6] sm:$0x1]
  %v129 = vperm.slane %v127, 0
  %131 = vmatpush.msra.mxu0 %v126
  %132 = vmatpush.msra.mxu0 %v125
  %133 = vmatpush.msra.mxu0 %v124
  %134 = vmatpush.msra.mxu0 %v123
  %135 = vmatpush.msra.mxu0 %v122
  %136 = vmatpush.msra.mxu0 %v121
  %137 = vmatpush.msra.mxu0 %v120
  %138 = vmatpush.msra.mxu0 %v119
  %139 = vmatpush.msra.mxu0 %v118
  %140 = vmatpush.msra.mxu0 %v117
  %141 = vmatpush.msra.mxu0 %v116
  %142 = vmatpush.msra.mxu0 %v115
  %143 = vmatpush.msra.mxu0 %v114
  %144 = vmatpush.msra.mxu0 %v113
  %145 = vmatpush.msra.mxu0 %v112
  %146 = vmatpush.msra.mxu0 %v111
  %147 = vmatmul.f32.gmra.mxu0 %v110
  %v148 = vpop.f32.mrf.mxu0
  %v149 = vadd.f32 %v129, %v148
  %150 = vdwg.mxu0
  %v151 = vmax.f32 %v149, 0.0
  %v152 = vld [vmem:[%s7] sm:$0xff]
  %v153 = vld [vmem:[%s7 + $0x8] sm:$0xff]
  %v154 = vld [vmem:[%s7 + $0x10] sm:$0xff]
  %v155 = vld [vmem:[%s7 + $0x18] sm:$0xff]
  %v156 = vld [vmem:[%s7 + $0x20] sm:$0xff]
  %v157 = vld [vmem:[%s7 + $0x28] sm:$0xff]
  %v158 = vld [vmem:[%s7 + $0x30] sm:$0xff]
  %v159 = vld [vmem:[%s7 + $0x38] sm:$0xff]
  %v160 = vld [vmem:[%s8] sm:$0x1]
  %v162 = vperm.slane %v160, 0
  %v165 = vsel %vm86, %v151, 0
  %167 = vmatpush.msra.mxu0 0.0
  %168 = vmatpush.msra.mxu0 0.0
  %169 = vmatpush.msra.mxu0 0.0
  %170 = vmatpush.msra.mxu0 0.0
  %171 = vmatpush.msra.mxu0 0.0
  %172 = vmatpush.msra.mxu0 0.0
  %173 = vmatpush.msra.mxu0 0.0
  %174 = vmatpush.msra.mxu0 0.0
  %175 = vmatpush.msra.mxu0 %v159
  %176 = vmatpush.msra.mxu0 %v158
  %177 = vmatpush.msra.mxu0 %v157
  %178 = vmatpush.msra.mxu0 %v156
  %179 = vmatpush.msra.mxu0 %v155
  %180 = vmatpush.msra.mxu0 %v154
  %181 = vmatpush.msra.mxu0 %v153
  %182 = vmatpush.msra.mxu0 %v152
  %183 = vmatmul.f32.gmra.mxu0 %v165
  %v184 = vpop.f32.mrf.mxu0
  %v185 = vadd.f32 %v162, %v184
  %186 = vdwg.mxu0
  %v187 = vmax.f32 %v185, 0.0
  %v188 = vld [vmem:[%s9] sm:$0x1]
  %v190 = vperm.slane %v188, 0
  %v192 = vmul.f32 %v187, %v190
  %v193 = vsel %vm49, %v192, 0.0
  %194 = vadd.xlane.f32.xlu0 %v193
  %v195 = vpop.xlane.xlu0 %194
  %v196 = vld [vmem:[#allocation2] sm:$0x1]
  %v198 = vperm.slane %v196, 0
  %v200 = vadd.f32 %v195, %v198
  %vm201 = vcmask 7168
  %202 = vst.msk [vmem:[%s11] sm:$0xff] %vm201, %v200
  // Predicated region
  $region46: #{tpu_custom_call.1} parent=0 // pred_check
    _
  $region47: #{tpu_custom_call.1} parent=0 // pred_check_branch
    %204 = sbr.rel (0) target = $region49
  $region48: #{tpu_custom_call.1} parent=0 // pred_region
    _
  $region49: #{tpu_custom_call.1} parent=0 // pred_fallthru
    _
  // Predicated region
  $region50: #{tpu_custom_call.1} parent=0 // pred_check
    _
  $region51: #{tpu_custom_call.1} parent=0 // pred_check_branch
    %206 = sbr.rel (0) target = $region53
  $region52: #{tpu_custom_call.1} parent=0 // pred_region
    _
  $region53: #{tpu_custom_call.1} parent=0 // pred_fallthru
    _

</llo_original>
